<compile_context>
chip_gen: v5e
topology: v5e:2x2
jax: 0.10.0
libtpu: 0.0.40
codegen_flags: <defaults>
</compile_context>

<pallas_src>
import jax
import jax.numpy as jnp
from jax import lax
from jax.experimental import pallas as pl
from jax.experimental.pallas import tpu as pltpu


def _mean_for_ones_kernel(n_ref, pred_ref, vals_ref, out_ref,
                          g_ref, acc_sum_ref, acc_cnt_ref):
    p = pl.program_id(0)            # "parallel" split (v7x dual TensorCore)
    i = pl.program_id(1)            # "arbitrary" reduction over row tiles
    inner = pl.num_programs(1)

    sub, lanes = pred_ref.shape     # lanes == 128 * C (class-interleaved)
    c = lanes // 128

    @pl.when(i == 0)
    def _init():
        # Selection matrix G[l, g] = 1 iff l == g*c + 1: picks the class-1 lane of every
        # 128-row group and compacts it to lane g.  Built once per core, kept in scratch.
        row = lax.broadcasted_iota(jnp.int32, (lanes, 128), 0)
        col = lax.broadcasted_iota(jnp.int32, (lanes, 128), 1)
        g_ref[...] = (row == col * c + 1).astype(jnp.bfloat16)
        acc_sum_ref[...] = jnp.zeros_like(acc_sum_ref)
        acc_cnt_ref[...] = jnp.zeros_like(acc_cnt_ref)

    x = pred_ref[...]               # (sub, 128*c), native dtype, classes interleaved

    # argmax(pred, -1) == 1, evaluated at lanes l = g*c + 1 (class-1 lane of group g):
    # roll(x, 1)[l]       == x[l-1]  -> class 0   (strict '>')
    # roll(x, L-(j-1))[l] == x[l+j-1] -> class j  ('>=')
    # Lanes with l % c != 1 hold garbage but are never read by the selection matmul.
    m = x > pltpu.roll(x, shift=1, axis=1)
    for j in range(2, c):
        m = jnp.logical_and(m, x >= pltpu.roll(x, shift=lanes - (j - 1), axis=1))

    # Compact interleaved mask (sub, 128*c) -> (sub, 128), aligned with vals.
    # bf16 0/1 times a 0/1 matrix with one nonzero per column -> exact.
    cm = jnp.dot(m.astype(jnp.bfloat16), g_ref[...],
                 preferred_element_type=jnp.float32)

    # Mask rows beyond the true N (ragged last tile / clamped duplicate tiles).
    blk = p * inner + i                                   # un-clamped tile index
    r_io = lax.broadcasted_iota(jnp.int32, (sub, 128), 0)
    l_io = lax.broadcasted_iota(jnp.int32, (sub, 128), 1)
    row_id = (blk * sub + r_io) * 128 + l_io
    valid = row_id < n_ref[0]

    vals = vals_ref[...].astype(jnp.float32)              # cast in-kernel (VPU slack)

    # Tiny accumulator RMW: per-tile partials reduced to (1,128) before the +=.
    acc_sum_ref[...] += jnp.sum(jnp.where(valid, vals * cm, 0.0), axis=0, keepdims=True)
    acc_cnt_ref[...] += jnp.sum(jnp.where(valid, cm, 0.0), axis=0, keepdims=True)

    @pl.when(i == inner - 1)
    def _finalize():
        s_tot = jnp.sum(acc_sum_ref[...])
        c_tot = jnp.sum(acc_cnt_ref[...])
        ridx = lax.broadcasted_iota(jnp.int32, (8, 128), 0)
        out_ref[...] = jnp.where(ridx == 0, s_tot,
                                 jnp.where(ridx == 1, c_tot, 0.0)).astype(jnp.float32)


def _round_down_mult(x, m):
    return (x // m) * m


def mean_for_ones_forward(pred, target_values, *, block_rows_128=None,
                          vmem_input_budget_bytes=8 * 1024 * 1024):
    """pred: (..., C); target_values: same leading dims as pred[..., 0].

    Returns (mean, masked_sum, masked_count) as f32 scalars.
    `block_rows_128` = rows (in units of 128 flattened pred rows) per grid step;
    None -> derived from a VMEM budget.
    """
    c = pred.shape[-1]
    pred2d = pred.reshape(-1, c)
    vals = target_values.reshape(-1)
    n = pred2d.shape[0]
    zero = jnp.float32(0.0)
    if c < 2 or n == 0:
        return zero, zero, zero

    n128 = pl.cdiv(n, 128)
    n_pad = n128 * 128

    pred_flat = pred2d.reshape(-1)                 # free, contiguous view
    if n_pad != n:
        # TODO(synk): the only full-HBM copy; hit only when N is not a multiple of 128.
        pred_flat = jnp.pad(pred_flat, (0, (n_pad - n) * c))
        vals = jnp.pad(vals, (0, n_pad - n))
    pred_il = pred_flat.reshape(n128, 128 * c)     # class-interleaved, lane-dense view
    vals2d = vals.reshape(n128, 128)               # native dtype (no host f32 cast)

    # ---- tile sizing from a VMEM budget (double-buffered inputs, scales with C/dtype)
    pred_isz = pred_il.dtype.itemsize
    val_isz = vals2d.dtype.itemsize
    per_subrow = 2 * 128 * c * pred_isz + 2 * 128 * val_isz
    if block_rows_128 is None:
        sub = max(8, min(512, _round_down_mult(vmem_input_budget_bytes // per_subrow, 8)))
    else:
        sub = max(8, _round_down_mult(int(block_rows_128), 8))
    sub = min(sub, n128)                           # full dim is always a legal block

    nb = pl.cdiv(n128, sub)                        # total row tiles
    num_splits = 2 if n128 >= 2 * sub else 1       # use both TensorCores on v7x
    inner = pl.cdiv(nb, num_splits)

    def row_block(pidx, iidx, n_sref):
        del n_sref
        # clamp so fully-out-of-range tiles re-read the last valid tile (masked in-kernel)
        return (jnp.minimum(pidx * inner + iidx, nb - 1), 0)

    n_arr = jnp.array([n], dtype=jnp.int32)

    out = pl.pallas_call(
        _mean_for_ones_kernel,
        out_shape=jax.ShapeDtypeStruct((num_splits, 8, 128), jnp.float32),
        grid_spec=pltpu.PrefetchScalarGridSpec(
            num_scalar_prefetch=1,
            grid=(num_splits, inner),
            in_specs=[
                pl.BlockSpec((sub, 128 * c), row_block),    # pred, interleaved
                pl.BlockSpec((sub, 128), row_block),        # target values
            ],
            out_specs=pl.BlockSpec((None, 8, 128), lambda pidx, iidx, ns: (pidx, 0, 0)),
            scratch_shapes=[
                pltpu.VMEM((128 * c, 128), jnp.bfloat16),   # class-1 selection matrix
                pltpu.VMEM((1, 128), jnp.float32),          # masked-sum lane partials
                pltpu.VMEM((1, 128), jnp.float32),          # count lane partials
            ],
        ),
        compiler_params=pltpu.CompilerParams(
            dimension_semantics=("parallel", "arbitrary"),
            vmem_limit_bytes=32 * 1024 * 1024,
        ),
        cost_estimate=pl.CostEstimate(
            flops=int(pred_il.size * (c + 4) + 2 * n128 * (128 * c) * 128),
            transcendentals=0,
            bytes_accessed=int(pred_il.size * pred_isz + vals2d.size * val_isz
                               + num_splits * 8 * 128 * 4),
        ),
    )(n_arr, pred_il, vals2d)

    s = jnp.sum(out[:, 0, 0])
    cnt = jnp.sum(out[:, 1, 0])
    mean = jnp.where(cnt > 0, s / jnp.maximum(cnt, 1.0), 0.0)
    return mean, s, cnt


class MeanForOnesMetric:
    """Stateful wrapper mirroring the PyTorch module's buffers (plain JAX glue)."""

    def __init__(self, eval_target: str, reduce_type: str = "mean"):
        self.eval_target = eval_target
        self.reduce_type = reduce_type
        self.total_sum = jnp.float32(0.0)
        self.total_count = jnp.float32(0.0)

    def forward(self, pred, targets, **kwargs):
        mean, s, cnt = mean_for_ones_forward(pred, targets[self.eval_target], **kwargs)
        # buffers only update when count > 0 (matches the torch branch)
        self.total_sum = self.total_sum + jnp.where(cnt > 0, s, 0.0)
        self.total_count = self.total_count + jnp.where(cnt > 0, cnt, 0.0)
        return mean

    def compute(self):
        if self.reduce_type == "mean":
            return jnp.where(
                self.total_count == 0,
                jnp.float32(0.0),
                self.total_sum / jnp.maximum(self.total_count, 1.0),
            )
        return jnp.float32(0.0)  # TODO(synk): other reduce_type values are undefined in the reference

    def reset(self):
        self.total_sum = jnp.float32(0.0)
        self.total_count = jnp.float32(0.0)


if __name__ == "__main__":
    def reference(pred, vals):
        mask = (jnp.argmax(pred, axis=-1) == 1).astype(jnp.float32)
        cnt = jnp.sum(mask)
        s = jnp.sum(vals.astype(jnp.float32) * mask)
        mean = jnp.where(cnt > 0, s / jnp.maximum(cnt, 1.0), 0.0)
        return mean, s, cnt

    key = jax.random.PRNGKey(0)

    # Case 1: stateful wrapper, N = 2*64 = 128 (lane-aligned -> zero-copy path).
    key, k1, k2 = jax.random.split(key, 3)
    pred = jax.random.normal(k1, (2, 64, 4), dtype=jnp.float32)
    targets = {"reward": jax.random.normal(k2, (2, 64), dtype=jnp.float32)}
    metric = MeanForOnesMetric(eval_target="reward")
    got = jax.block_until_ready(metric.forward(pred, targets))
    ref_mean, _, _ = reference(pred, targets["reward"])
    assert jnp.allclose(got, ref_mean, atol=1e-5), (got, ref_mean)
    assert jnp.allclose(metric.compute(), ref_mean, atol=1e-5)

    # Case 2: ragged N (2*16 = 32, not a multiple of 128) -> padded fallback path.
    key, k1, k2 = jax.random.split(key, 3)
    pred = jax.random.normal(k1, (2, 16, 4), dtype=jnp.float32)
    vals = jax.random.normal(k2, (2, 16), dtype=jnp.float32)
    mean, s, cnt = mean_for_ones_forward(pred, vals)
    jax.block_until_ready(mean)
    ref_mean, ref_sum, ref_cnt = reference(pred, vals)
    assert jnp.allclose(cnt, ref_cnt), (cnt, ref_cnt)
    assert jnp.allclose(s, ref_sum, atol=1e-5), (s, ref_sum)
    assert jnp.allclose(mean, ref_mean, atol=1e-5), (mean, ref_mean)

    # Case 3: bf16 inputs, C=3, N=4200: multi-tile grid, ragged last tile, and the
    # dual-TensorCore "parallel" split (small forced tiles so all code paths are hit).
    key, k1, k2 = jax.random.split(key, 3)
    pred = jax.random.normal(k1, (6, 700, 3), dtype=jnp.float32).astype(jnp.bfloat16)
    vals = jax.random.normal(k2, (6, 700), dtype=jnp.float32).astype(jnp.bfloat16)
    mean, s, cnt = mean_for_ones_forward(pred, vals, block_rows_128=8)
    jax.block_until_ready(mean)
    ref_mean, ref_sum, ref_cnt = reference(pred, vals)
    assert jnp.allclose(cnt, ref_cnt), (cnt, ref_cnt)
    assert jnp.allclose(s, ref_sum, atol=1e-3, rtol=1e-3), (s, ref_sum)
    assert jnp.allclose(mean, ref_mean, atol=1e-3, rtol=1e-3), (mean, ref_mean)

    print("KERNEL_OK")
</pallas_src>

<mosaic_0001>
module attributes {stable_mosaic.version = 11 : i64} {
  func.func @_mean_for_ones_kernel(%arg0: i32, %arg1: i32, %arg2: memref<1xi32, #tpu.memory_space<smem>>, %arg3: memref<1x512xf32, #tpu.memory_space<vmem>>, %arg4: memref<1x128xf32, #tpu.memory_space<vmem>>, %arg5: memref<1x8x128xf32, #tpu.memory_space<vmem>>, %arg6: memref<512x128xbf16, #tpu.memory_space<vmem>>, %arg7: memref<1x128xf32, #tpu.memory_space<vmem>>, %arg8: memref<1x128xf32, #tpu.memory_space<vmem>>) attributes {dimension_semantics = [#tpu.dimension_semantics<parallel>, #tpu.dimension_semantics<arbitrary>], iteration_bounds = array<i64: 1, 1>, scalar_prefetch = 1 : i64, scratch_operands = 3 : i64, tpu.core_type = #tpu.core_type<tc>, window_params = [{transform_indices = @transform_0, window_bounds = array<i64: 1, 512>}, {transform_indices = @transform_1, window_bounds = array<i64: 1, 128>}, {transform_indices = @transform_2, window_bounds = array<i64: 1, 8, 128>}]} {
    %c0_i32 = arith.constant 0 : i32
    %0 = arith.cmpi eq, %arg1, %c0_i32 : i32
    %1 = arith.extui %0 : i1 to i32
    %c0_i32_0 = arith.constant 0 : i32
    %2 = arith.cmpi ne, %1, %c0_i32_0 : i32
    scf.if %2 {
      %49 = tpu.iota {dimensions = array<i32: 0>} : vector<512x128xi32>
      %50 = tpu.iota {dimensions = array<i32: 1>} : vector<512x128xi32>
      %c4_i32 = arith.constant 4 : i32
      %51 = vector.broadcast %c4_i32 : i32 to vector<512x128xi32>
      %52 = arith.muli %50, %51 : vector<512x128xi32>
      %c1_i32_23 = arith.constant 1 : i32
      %53 = vector.broadcast %c1_i32_23 : i32 to vector<512x128xi32>
      %54 = arith.addi %52, %53 : vector<512x128xi32>
      %55 = arith.cmpi eq, %49, %54 : vector<512x128xi32>
      %56 = arith.extui %55 : vector<512x128xi1> to vector<512x128xi32>
      %57 = arith.sitofp %56 : vector<512x128xi32> to vector<512x128xf32>
      %58 = arith.truncf %57 : vector<512x128xf32> to vector<512x128xbf16>
      %c0_24 = arith.constant 0 : index
      %c0_25 = arith.constant 0 : index
      %59 = vector.load %arg6[%c0_24, %c0_25] : memref<512x128xbf16, #tpu.memory_space<vmem>>, vector<512x128xbf16>
      tpu.vector_store %arg6[%c0_24, %c0_25], %58 {strides = array<i32>} : memref<512x128xbf16, #tpu.memory_space<vmem>>, vector<512x128xbf16>,
      %cst_26 = arith.constant 0.000000e+00 : f32
      %60 = vector.broadcast %cst_26 : f32 to vector<1x128xf32>
      %c0_27 = arith.constant 0 : index
      %c0_28 = arith.constant 0 : index
      %61 = vector.load %arg7[%c0_27, %c0_28] : memref<1x128xf32, #tpu.memory_space<vmem>>, vector<1x128xf32>
      tpu.vector_store %arg7[%c0_27, %c0_28], %60 {strides = array<i32>} : memref<1x128xf32, #tpu.memory_space<vmem>>, vector<1x128xf32>,
      %cst_29 = arith.constant 0.000000e+00 : f32
      %62 = vector.broadcast %cst_29 : f32 to vector<1x128xf32>
      %c0_30 = arith.constant 0 : index
      %c0_31 = arith.constant 0 : index
      %63 = vector.load %arg8[%c0_30, %c0_31] : memref<1x128xf32, #tpu.memory_space<vmem>>, vector<1x128xf32>
      tpu.vector_store %arg8[%c0_30, %c0_31], %62 {strides = array<i32>} : memref<1x128xf32, #tpu.memory_space<vmem>>, vector<1x128xf32>,
    } else {
    }
    %c0 = arith.constant 0 : index
    %c0_1 = arith.constant 0 : index
    %3 = vector.load %arg3[%c0, %c0_1] : memref<1x512xf32, #tpu.memory_space<vmem>>, vector<1x512xf32>
    %c1_i32 = arith.constant 1 : i32
    %4 = tpu.dynamic_rotate %3 by %c1_i32 dim 1 : vector<1x512xf32>, i32 -> vector<1x512xf32>
    %5 = arith.cmpf ogt, %3, %4 : vector<1x512xf32>
    %c511_i32 = arith.constant 511 : i32
    %6 = tpu.dynamic_rotate %3 by %c511_i32 dim 1 : vector<1x512xf32>, i32 -> vector<1x512xf32>
    %7 = arith.cmpf oge, %3, %6 : vector<1x512xf32>
    %8 = arith.andi %5, %7 : vector<1x512xi1>
    %c510_i32 = arith.constant 510 : i32
    %9 = tpu.dynamic_rotate %3 by %c510_i32 dim 1 : vector<1x512xf32>, i32 -> vector<1x512xf32>
    %10 = arith.cmpf oge, %3, %9 : vector<1x512xf32>
    %11 = arith.andi %8, %10 : vector<1x512xi1>
    %12 = arith.extui %11 : vector<1x512xi1> to vector<1x512xi32>
    %13 = arith.sitofp %12 : vector<1x512xi32> to vector<1x512xf32>
    %14 = arith.truncf %13 : vector<1x512xf32> to vector<1x512xbf16>
    %c0_2 = arith.constant 0 : index
    %c0_3 = arith.constant 0 : index
    %15 = vector.load %arg6[%c0_2, %c0_3] : memref<512x128xbf16, #tpu.memory_space<vmem>>, vector<512x128xbf16>
    %cst = arith.constant dense<0.000000e+00> : vector<1x128xf32>
    %16 = tpu.matmul %14, %15, %cst {dimension_numbers = #tpu.dot_dimension_numbers<[1], [0], [0], [1], [0, 0, 1, 1], [], []>} : vector<1x512xbf16>, vector<512x128xbf16>, vector<1x128xf32> -> vector<1x128xf32>
    %c1_i32_4 = arith.constant 1 : i32
    %17 = arith.muli %arg0, %c1_i32_4 : i32
    %18 = arith.addi %17, %arg1 : i32
    %19 = tpu.iota {dimensions = array<i32: 0>} : vector<1x128xi32>
    %20 = tpu.iota {dimensions = array<i32: 1>} : vector<1x128xi32>
    %c1_i32_5 = arith.constant 1 : i32
    %21 = arith.muli %18, %c1_i32_5 : i32
    %22 = vector.broadcast %21 : i32 to vector<1x128xi32>
    %23 = arith.addi %22, %19 : vector<1x128xi32>
    %c128_i32 = arith.constant 128 : i32
    %24 = vector.broadcast %c128_i32 : i32 to vector<1x128xi32>
    %25 = arith.muli %23, %24 : vector<1x128xi32>
    %26 = arith.addi %25, %20 : vector<1x128xi32>
    %c0_6 = arith.constant 0 : index
    %27 = memref.load %arg2[%c0_6] : memref<1xi32, #tpu.memory_space<smem>>
    %28 = vector.broadcast %27 : i32 to vector<1x128xi32>
    %29 = arith.cmpi slt, %26, %28 : vector<1x128xi32>
    %c0_7 = arith.constant 0 : index
    %c0_8 = arith.constant 0 : index
    %30 = vector.load %arg4[%c0_7, %c0_8] : memref<1x128xf32, #tpu.memory_space<vmem>>, vector<1x128xf32>
    %c0_9 = arith.constant 0 : index
    %c0_10 = arith.constant 0 : index
    %31 = vector.load %arg7[%c0_9, %c0_10] : memref<1x128xf32, #tpu.memory_space<vmem>>, vector<1x128xf32>
    %32 = arith.mulf %30, %16 : vector<1x128xf32>
    %cst_11 = arith.constant 0.000000e+00 : f32
    %33 = vector.broadcast %cst_11 : f32 to vector<1x128xf32>
    %34 = arith.select %29, %32, %33 : vector<1x128xi1>, vector<1x128xf32>
    %cst_12 = arith.constant dense<0.000000e+00> : vector<128xf32>
    %35 = vector.multi_reduction <add>, %34, %cst_12 [0] : vector<1x128xf32> to vector<128xf32>
    %36 = vector.shape_cast %35 : vector<128xf32> to vector<1x128xf32>
    %37 = arith.addf %31, %36 : vector<1x128xf32>
    %c0_13 = arith.constant 0 : index
    %c0_14 = arith.constant 0 : index
    %38 = vector.load %arg7[%c0_13, %c0_14] : memref<1x128xf32, #tpu.memory_space<vmem>>, vector<1x128xf32>
    tpu.vector_store %arg7[%c0_13, %c0_14], %37 {strides = array<i32>} : memref<1x128xf32, #tpu.memory_space<vmem>>, vector<1x128xf32>,
    %c0_15 = arith.constant 0 : index
    %c0_16 = arith.constant 0 : index
    %39 = vector.load %arg8[%c0_15, %c0_16] : memref<1x128xf32, #tpu.memory_space<vmem>>, vector<1x128xf32>
    %cst_17 = arith.constant 0.000000e+00 : f32
    %40 = vector.broadcast %cst_17 : f32 to vector<1x128xf32>
    %41 = arith.select %29, %16, %40 : vector<1x128xi1>, vector<1x128xf32>
    %cst_18 = arith.constant dense<0.000000e+00> : vector<128xf32>
    %42 = vector.multi_reduction <add>, %41, %cst_18 [0] : vector<1x128xf32> to vector<128xf32>
    %43 = vector.shape_cast %42 : vector<128xf32> to vector<1x128xf32>
    %44 = arith.addf %39, %43 : vector<1x128xf32>
    %c0_19 = arith.constant 0 : index
    %c0_20 = arith.constant 0 : index
    %45 = vector.load %arg8[%c0_19, %c0_20] : memref<1x128xf32, #tpu.memory_space<vmem>>, vector<1x128xf32>
    tpu.vector_store %arg8[%c0_19, %c0_20], %44 {strides = array<i32>} : memref<1x128xf32, #tpu.memory_space<vmem>>, vector<1x128xf32>,
    %c0_i32_21 = arith.constant 0 : i32
    %46 = arith.cmpi eq, %arg1, %c0_i32_21 : i32
    %47 = arith.extui %46 : i1 to i32
    %c0_i32_22 = arith.constant 0 : i32
    %48 = arith.cmpi ne, %47, %c0_i32_22 : i32
    scf.if %48 {
      %c0_23 = arith.constant 0 : index
      %c0_24 = arith.constant 0 : index
      %49 = vector.load %arg7[%c0_23, %c0_24] : memref<1x128xf32, #tpu.memory_space<vmem>>, vector<1x128xf32>
      %50 = vector.shape_cast %49 : vector<1x128xf32> to vector<1x1x128xf32>
      %cst_25 = arith.constant dense<0.000000e+00> : vector<1xf32>
      %51 = vector.multi_reduction <add>, %50, %cst_25 [1, 2] : vector<1x1x128xf32> to vector<1xf32>
      %52 = vector.shape_cast %51 : vector<1xf32> to vector<1x1x1xf32>
      %53 = vector.extract %52[0, 0, 0] : f32 from vector<1x1x1xf32>
      %c0_26 = arith.constant 0 : index
      %c0_27 = arith.constant 0 : index
      %54 = vector.load %arg8[%c0_26, %c0_27] : memref<1x128xf32, #tpu.memory_space<vmem>>, vector<1x128xf32>
      %55 = vector.shape_cast %54 : vector<1x128xf32> to vector<1x1x128xf32>
      %cst_28 = arith.constant dense<0.000000e+00> : vector<1xf32>
      %56 = vector.multi_reduction <add>, %55, %cst_28 [1, 2] : vector<1x1x128xf32> to vector<1xf32>
      %57 = vector.shape_cast %56 : vector<1xf32> to vector<1x1x1xf32>
      %58 = vector.extract %57[0, 0, 0] : f32 from vector<1x1x1xf32>
      %59 = tpu.iota {dimensions = array<i32: 0>} : vector<8x128xi32>
      %c0_i32_29 = arith.constant 0 : i32
      %60 = vector.broadcast %c0_i32_29 : i32 to vector<8x128xi32>
      %61 = arith.cmpi eq, %59, %60 : vector<8x128xi32>
      %c1_i32_30 = arith.constant 1 : i32
      %62 = vector.broadcast %c1_i32_30 : i32 to vector<8x128xi32>
      %63 = arith.cmpi eq, %59, %62 : vector<8x128xi32>
      %cst_31 = arith.constant 0.000000e+00 : f32
      %64 = vector.broadcast %58 : f32 to vector<8x128xf32>
      %65 = vector.broadcast %cst_31 : f32 to vector<8x128xf32>
      %66 = arith.select %63, %64, %65 : vector<8x128xi1>, vector<8x128xf32>
      %67 = vector.broadcast %53 : f32 to vector<8x128xf32>
      %68 = arith.select %61, %67, %66 : vector<8x128xi1>, vector<8x128xf32>
      %c0_32 = arith.constant 0 : index
      %c0_33 = arith.constant 0 : index
      %c0_34 = arith.constant 0 : index
      %69 = vector.load %arg5[%c0_32, %c0_33, %c0_34] : memref<1x8x128xf32, #tpu.memory_space<vmem>>, vector<1x8x128xf32>
      %70 = vector.shape_cast %69 : vector<1x8x128xf32> to vector<8x128xf32>
      %71 = vector.shape_cast %68 : vector<8x128xf32> to vector<1x8x128xf32>
      tpu.vector_store %arg5[%c0_32, %c0_33, %c0_34], %71 {strides = array<i32>} : memref<1x8x128xf32, #tpu.memory_space<vmem>>, vector<1x8x128xf32>,
    } else {
    }
    return
  }
  func.func @transform_0(%arg0: i32, %arg1: i32, %arg2: memref<1xi32, #tpu.memory_space<smem>>) -> (i32, i32) {
    %c1_i32 = arith.constant 1 : i32
    %0 = arith.muli %arg0, %c1_i32 : i32
    %1 = arith.addi %0, %arg1 : i32
    %c0_i32 = arith.constant 0 : i32
    %2 = arith.minsi %1, %c0_i32 : i32
    %c0_i32_0 = arith.constant 0 : i32
    %c0_i32_1 = arith.constant 0 : i32
    return %2, %c0_i32_0 : i32, i32
  }
  func.func @transform_1(%arg0: i32, %arg1: i32, %arg2: memref<1xi32, #tpu.memory_space<smem>>) -> (i32, i32) {
    %c1_i32 = arith.constant 1 : i32
    %0 = arith.muli %arg0, %c1_i32 : i32
    %1 = arith.addi %0, %arg1 : i32
    %c0_i32 = arith.constant 0 : i32
    %2 = arith.minsi %1, %c0_i32 : i32
    %c0_i32_0 = arith.constant 0 : i32
    %c0_i32_1 = arith.constant 0 : i32
    return %2, %c0_i32_0 : i32, i32
  }
  func.func @transform_2(%arg0: i32, %arg1: i32, %arg2: memref<1xi32, #tpu.memory_space<smem>>) -> (i32, i32, i32) {
    %c0_i32 = arith.constant 0 : i32
    %c0_i32_0 = arith.constant 0 : i32
    %c0_i32_1 = arith.constant 0 : i32
    return %arg0, %c0_i32, %c0_i32_0 : i32, i32, i32
  }
}

</mosaic_0001>

<llo_original>
// kernel: tpu_custom_call.1
$region0: #{tpu_custom_call.1}
  #allocation0 [shape = 'u32[]', space=smem, size = 0x4, offset = 0x4, fixed_abs, tag = 'smem constant byte address 0x4 - core index']
  #allocation1 [shape = 'u32[72,128]{1,0:T(1,128)}', space=vmem, size = 0x9000, scoped, tag = 'internal scratch']
  #allocation2 [shape = 'bf16[512,128]{1,0:T(8,128)(2,1)}', space=vmem, size = 0x20000, scoped, tag = 'scratch operand']
  #allocation3 [shape = 'f32[1,128]{1,0:T(1,128)}', space=vmem, size = 0x200, scoped, tag = 'scratch operand']
  #allocation4 [shape = 'f32[1,128]{1,0:T(1,128)}', space=vmem, size = 0x200, scoped, tag = 'scratch operand']
  #allocation5 [shape = 's32[1]{0}', space=sflag, size = 0x4, scoped, tag = 'scoped memory for tpu_custom_call.1']
  #allocation6 [shape = 's32[1]{0:T(128)S(6)}', space=smem, size = 0x200, scoped, tag = 'prefetched SMEM operand 0']
  %s0 = inlined_call_operand.<no memory space> [shape: s32[1], index: 0, kind: input, shape index: {}]
  %s1 = inlined_call_operand.hbm [shape: f32[1,512], index: 1, kind: input, shape index: {}]
  %s2 = inlined_call_operand.vmem [shape: f32[1,128], index: 2, kind: input, shape index: {}]
  %s3 = inlined_call_operand.hbm [shape: f32[1,8,128], index: 3, kind: output, shape index: {}]
  %s4 = sld [smem:[#allocation0]]
  $region30: #{tpu_custom_call.1} parent=0
    _
  %s6 = ssub.s32 1, %s4
  %s7 = scalar_select 0, %s6, %s4
  %8 = sst [smem:[#allocation6]] %s0
  $region1: #{tpu_custom_call.1} parent=0
    #allocation7 [shape = 'u8[2048]{0}', space=vmem, size = 0x800, scoped, tag = 'input window, operand 1, single buffered']
    #allocation8 [shape = 's32[1]{0}', space=sflag, size = 0x4, scoped, tag = 'scoped memory for tpu_custom_call.1']
    #allocation9 [shape = 's32[1]{0}', space=sflag, size = 0x4, scoped, tag = 'scoped memory for tpu_custom_call.1']
    #allocation10 [shape = 'u8[4096]{0}', space=vmem, size = 0x1000, scoped, tag = 'output window, operand 0, single buffered']
    %9 = vsyncpa [#allocation8], 0
    %10 = vsyncpa [#allocation9], 0
    // Predicated region
    $region2: #{tpu_custom_call.1} parent=1 // pred_check
      _
    $region3: #{tpu_custom_call.1} parent=1 // pred_check_branch
      %12 = sbr.rel (0) target = $region5
    $region4: #{tpu_custom_call.1} parent=1 // pred_region
      %s13 = sadd.s32 0, 0
      %p14 = scmp.lt.s32.totalorder %s13, 0
      %s15 = scalar_select %p14, %s13, 0
      %17 = vsyncadd [#allocation8], 0
      %s18 = smul.addr %s15, 4
      %s19 = scalar_lea.hbm %s1, %s18
      %s21 = sshll.u32 %s19, 4
      %s22 = int_to_ptr.hbm [resolvable:$true] %s21
      %s23 = sshll.u32 [#allocation7], 4
      %s24 = int_to_ptr.vmem [resolvable:$true] %s23
      %26 = dma.hbm_to_vmem [thread:$0]  %s22, 64, %s24, [#allocation8]
    $region5: #{tpu_custom_call.1} parent=1 // pred_fallthru
      _
    // Predicated region
    $region6: #{tpu_custom_call.1} parent=1 // pred_check
      _
    $region7: #{tpu_custom_call.1} parent=1 // pred_check_branch
      %28 = sbr.rel (0) target = $region9
    $region8: #{tpu_custom_call.1} parent=1 // pred_region
      %s29 = sadd.s32 0, 0
      %p30 = scmp.lt.s32.totalorder %s29, 0
      %s31 = scalar_select %p30, %s29, 0
      %p32 = scmp.lt.s32.totalorder %s31, 0
      %s33 = scalar_select %p32, %s31, 0
      %s34 = scalar_lea.vmem %s2, %s33
      %s35 = sadd.s32 0, 0
      %p36 = scmp.lt.s32.totalorder %s35, 0
      %s37 = scalar_select %p36, %s35, 0
    $region9: #{tpu_custom_call.1} parent=1 // pred_fallthru
      _
    // Predicated region
    $region10: #{tpu_custom_call.1} parent=1 // pred_check
      _
    $region11: #{tpu_custom_call.1} parent=1 // pred_check_branch
      %39 = sbr.rel (0) target = $region13
    $region12: #{tpu_custom_call.1} parent=1 // pred_region
      %41 = dma.done [#allocation8], 64
    $region13: #{tpu_custom_call.1} parent=1 // pred_fallthru
      _
    %s42 = sadd.s32 0, 0
    %p43 = scmp.lt.s32.totalorder %s42, 0
    %s44 = scalar_select %p43, %s42, 0
    %p45 = scmp.lt.s32.totalorder %s44, 0
    %s46 = scalar_select %p45, %s44, 0
    %s47 = scalar_lea.vmem %s2, %s46
    %s48 = sadd.s32 0, 0
    %p49 = scmp.lt.s32.totalorder %s48, 0
    %s50 = scalar_select %p49, %s48, 0
    %s51 = sadd.s32 0, 0
    %p52 = scmp.lt.s32.totalorder %s51, 0
    %s53 = scalar_select %p52, %s51, 0
    %p54 = scmp.lt.s32.totalorder %s53, 0
    %s55 = scalar_select %p54, %s53, 0
    %s56 = scalar_lea.vmem %s2, %s55
    %s57 = sadd.s32 0, 0
    %p58 = scmp.lt.s32.totalorder %s57, 0
    %s59 = scalar_select %p58, %s57, 0
    %p60 = scmp.eq.s32.totalorder 0, 0
    // Predicated region
    $region14: #{tpu_custom_call.1} parent=1 // pred_check
      %p61 = pneg %p60
    $region15: #{tpu_custom_call.1} parent=1 // pred_check_branch
      %63 = sbr.rel (%p61) target = $region17
    $region16: #{tpu_custom_call.1} parent=1 // pred_region
      %v64 = vlaneseq
      %v65 = vshrl.u32 %v64, 7
      %v66 = vadd.s32 %v65, 8
      %v67 = vadd.s32 %v65, 16
      %v68 = vadd.s32 %v65, 24
      %v69 = vadd.s32 %v65, 32
      %v70 = vadd.s32 %v65, 40
      %v71 = vadd.s32 %v65, 48
      %v72 = vadd.s32 %v65, 56
      %v73 = vadd.s32 %v65, 64
      %v74 = vadd.s32 %v65, 72
      %v75 = vadd.s32 %v65, 80
      %v76 = vadd.s32 %v65, 88
      %v77 = vadd.s32 %v65, 96
      %v78 = vadd.s32 %v65, 104
      %v79 = vadd.s32 %v65, 112
      %v80 = vadd.s32 %v65, 120
      %v81 = vadd.s32 %v65, 128
      %v82 = vadd.s32 %v65, 136
      %v83 = vadd.s32 %v65, 144
      %v84 = vadd.s32 %v65, 152
      %v85 = vadd.s32 %v65, 160
      %v86 = vadd.s32 %v65, 168
      %v87 = vadd.s32 %v65, 176
      %v88 = vadd.s32 %v65, 184
      %v89 = vadd.s32 %v65, 192
      %v90 = vadd.s32 %v65, 200
      %v91 = vadd.s32 %v65, 208
      %v92 = vadd.s32 %v65, 216
      %v93 = vadd.s32 %v65, 224
      %v94 = vadd.s32 %v65, 232
      %v95 = vadd.s32 %v65, 240
      %v96 = vadd.s32 %v65, 248
      %v97 = vadd.s32 %v65, 256
      %v98 = vadd.s32 %v65, 264
      %v99 = vadd.s32 %v65, 272
      %v100 = vadd.s32 %v65, 280
      %v101 = vadd.s32 %v65, 288
      %v102 = vadd.s32 %v65, 296
      %v103 = vadd.s32 %v65, 304
      %v104 = vadd.s32 %v65, 312
      %v105 = vadd.s32 %v65, 320
      %v106 = vadd.s32 %v65, 328
      %v107 = vadd.s32 %v65, 336
      %v108 = vadd.s32 %v65, 344
      %v109 = vadd.s32 %v65, 352
      %v110 = vadd.s32 %v65, 360
      %v111 = vadd.s32 %v65, 368
      %v112 = vadd.s32 %v65, 376
      %v113 = vadd.s32 %v65, 384
      %v114 = vadd.s32 %v65, 392
      %v115 = vadd.s32 %v65, 400
      %v116 = vadd.s32 %v65, 408
      %v117 = vadd.s32 %v65, 416
      %v118 = vadd.s32 %v65, 424
      %v119 = vadd.s32 %v65, 432
      %v120 = vadd.s32 %v65, 440
      %v121 = vadd.s32 %v65, 448
      %v122 = vadd.s32 %v65, 456
      %v123 = vadd.s32 %v65, 464
      %v124 = vadd.s32 %v65, 472
      %v125 = vadd.s32 %v65, 480
      %v126 = vadd.s32 %v65, 488
      %v127 = vadd.s32 %v65, 496
      %v128 = vadd.s32 %v65, 504
      %v129 = vlaneseq
      %v130 = vand.u32 %v129, 127
      %v131 = vmul.u32 %v130, 4
      %v132 = vadd.s32 %v131, 1
      %vm133 = vcmp.eq.s32.totalorder %v65, %v132
      %vm134 = vcmp.eq.s32.totalorder %v66, %v132
      %vm135 = vcmp.eq.s32.totalorder %v67, %v132
      %vm136 = vcmp.eq.s32.totalorder %v68, %v132
      %vm137 = vcmp.eq.s32.totalorder %v69, %v132
      %vm138 = vcmp.eq.s32.totalorder %v70, %v132
      %vm139 = vcmp.eq.s32.totalorder %v71, %v132
      %vm140 = vcmp.eq.s32.totalorder %v72, %v132
      %vm141 = vcmp.eq.s32.totalorder %v73, %v132
      %vm142 = vcmp.eq.s32.totalorder %v74, %v132
      %vm143 = vcmp.eq.s32.totalorder %v75, %v132
      %vm144 = vcmp.eq.s32.totalorder %v76, %v132
      %vm145 = vcmp.eq.s32.totalorder %v77, %v132
      %vm146 = vcmp.eq.s32.totalorder %v78, %v132
      %vm147 = vcmp.eq.s32.totalorder %v79, %v132
      %vm148 = vcmp.eq.s32.totalorder %v80, %v132
      %vm149 = vcmp.eq.s32.totalorder %v81, %v132
      %vm150 = vcmp.eq.s32.totalorder %v82, %v132
      %vm151 = vcmp.eq.s32.totalorder %v83, %v132
      %vm152 = vcmp.eq.s32.totalorder %v84, %v132
      %vm153 = vcmp.eq.s32.totalorder %v85, %v132
      %vm154 = vcmp.eq.s32.totalorder %v86, %v132
      %vm155 = vcmp.eq.s32.totalorder %v87, %v132
      %vm156 = vcmp.eq.s32.totalorder %v88, %v132
      %vm157 = vcmp.eq.s32.totalorder %v89, %v132
      %vm158 = vcmp.eq.s32.totalorder %v90, %v132
      %vm159 = vcmp.eq.s32.totalorder %v91, %v132
      %vm160 = vcmp.eq.s32.totalorder %v92, %v132
      %vm161 = vcmp.eq.s32.totalorder %v93, %v132
      %vm162 = vcmp.eq.s32.totalorder %v94, %v132
      %vm163 = vcmp.eq.s32.totalorder %v95, %v132
      %vm164 = vcmp.eq.s32.totalorder %v96, %v132
      %vm165 = vcmp.eq.s32.totalorder %v97, %v132
      %vm166 = vcmp.eq.s32.totalorder %v98, %v132
      %vm167 = vcmp.eq.s32.totalorder %v99, %v132
      %vm168 = vcmp.eq.s32.totalorder %v100, %v132
      %vm169 = vcmp.eq.s32.totalorder %v101, %v132
      %vm170 = vcmp.eq.s32.totalorder %v102, %v132
      %vm171 = vcmp.eq.s32.totalorder %v103, %v132
      %vm172 = vcmp.eq.s32.totalorder %v104, %v132
      %vm173 = vcmp.eq.s32.totalorder %v105, %v132
      %vm174 = vcmp.eq.s32.totalorder %v106, %v132
      %vm175 = vcmp.eq.s32.totalorder %v107, %v132
      %vm176 = vcmp.eq.s32.totalorder %v108, %v132
      %vm177 = vcmp.eq.s32.totalorder %v109, %v132
      %vm178 = vcmp.eq.s32.totalorder %v110, %v132
      %vm179 = vcmp.eq.s32.totalorder %v111, %v132
      %vm180 = vcmp.eq.s32.totalorder %v112, %v132
      %vm181 = vcmp.eq.s32.totalorder %v113, %v132
      %vm182 = vcmp.eq.s32.totalorder %v114, %v132
      %vm183 = vcmp.eq.s32.totalorder %v115, %v132
      %vm184 = vcmp.eq.s32.totalorder %v116, %v132
      %vm185 = vcmp.eq.s32.totalorder %v117, %v132
      %vm186 = vcmp.eq.s32.totalorder %v118, %v132
      %vm187 = vcmp.eq.s32.totalorder %v119, %v132
      %vm188 = vcmp.eq.s32.totalorder %v120, %v132
      %vm189 = vcmp.eq.s32.totalorder %v121, %v132
      %vm190 = vcmp.eq.s32.totalorder %v122, %v132
      %vm191 = vcmp.eq.s32.totalorder %v123, %v132
      %vm192 = vcmp.eq.s32.totalorder %v124, %v132
      %vm193 = vcmp.eq.s32.totalorder %v125, %v132
      %vm194 = vcmp.eq.s32.totalorder %v126, %v132
      %vm195 = vcmp.eq.s32.totalorder %v127, %v132
      %vm196 = vcmp.eq.s32.totalorder %v128, %v132
      %v197 = vsel %vm133, 1, 0
      %v198 = vsel %vm134, 1, 0
      %v199 = vsel %vm135, 1, 0
      %v200 = vsel %vm136, 1, 0
      %v201 = vsel %vm137, 1, 0
      %v202 = vsel %vm138, 1, 0
      %v203 = vsel %vm139, 1, 0
      %v204 = vsel %vm140, 1, 0
      %v205 = vsel %vm141, 1, 0
      %v206 = vsel %vm142, 1, 0
      %v207 = vsel %vm143, 1, 0
      %v208 = vsel %vm144, 1, 0
      %v209 = vsel %vm145, 1, 0
      %v210 = vsel %vm146, 1, 0
      %v211 = vsel %vm147, 1, 0
      %v212 = vsel %vm148, 1, 0
      %v213 = vsel %vm149, 1, 0
      %v214 = vsel %vm150, 1, 0
      %v215 = vsel %vm151, 1, 0
      %v216 = vsel %vm152, 1, 0
      %v217 = vsel %vm153, 1, 0
      %v218 = vsel %vm154, 1, 0
      %v219 = vsel %vm155, 1, 0
      %v220 = vsel %vm156, 1, 0
      %v221 = vsel %vm157, 1, 0
      %v222 = vsel %vm158, 1, 0
      %v223 = vsel %vm159, 1, 0
      %v224 = vsel %vm160, 1, 0
      %v225 = vsel %vm161, 1, 0
      %v226 = vsel %vm162, 1, 0
      %v227 = vsel %vm163, 1, 0
      %v228 = vsel %vm164, 1, 0
      %v229 = vsel %vm165, 1, 0
      %v230 = vsel %vm166, 1, 0
      %v231 = vsel %vm167, 1, 0
      %v232 = vsel %vm168, 1, 0
      %v233 = vsel %vm169, 1, 0
      %v234 = vsel %vm170, 1, 0
      %v235 = vsel %vm171, 1, 0
      %v236 = vsel %vm172, 1, 0
      %v237 = vsel %vm173, 1, 0
      %v238 = vsel %vm174, 1, 0
      %v239 = vsel %vm175, 1, 0
      %v240 = vsel %vm176, 1, 0
      %v241 = vsel %vm177, 1, 0
      %v242 = vsel %vm178, 1, 0
      %v243 = vsel %vm179, 1, 0
      %v244 = vsel %vm180, 1, 0
      %v245 = vsel %vm181, 1, 0
      %v246 = vsel %vm182, 1, 0
      %v247 = vsel %vm183, 1, 0
      %v248 = vsel %vm184, 1, 0
      %v249 = vsel %vm185, 1, 0
      %v250 = vsel %vm186, 1, 0
      %v251 = vsel %vm187, 1, 0
      %v252 = vsel %vm188, 1, 0
      %v253 = vsel %vm189, 1, 0
      %v254 = vsel %vm190, 1, 0
      %v255 = vsel %vm191, 1, 0
      %v256 = vsel %vm192, 1, 0
      %v257 = vsel %vm193, 1, 0
      %v258 = vsel %vm194, 1, 0
      %v259 = vsel %vm195, 1, 0
      %v260 = vsel %vm196, 1, 0
      %v261 = vcvt.s32.f32 %v197
      %v262 = vcvt.s32.f32 %v198
      %v263 = vcvt.s32.f32 %v199
      %v264 = vcvt.s32.f32 %v200
      %v265 = vcvt.s32.f32 %v201
      %v266 = vcvt.s32.f32 %v202
      %v267 = vcvt.s32.f32 %v203
      %v268 = vcvt.s32.f32 %v204
      %v269 = vcvt.s32.f32 %v205
      %v270 = vcvt.s32.f32 %v206
      %v271 = vcvt.s32.f32 %v207
      %v272 = vcvt.s32.f32 %v208
      %v273 = vcvt.s32.f32 %v209
      %v274 = vcvt.s32.f32 %v210
      %v275 = vcvt.s32.f32 %v211
      %v276 = vcvt.s32.f32 %v212
      %v277 = vcvt.s32.f32 %v213
      %v278 = vcvt.s32.f32 %v214
      %v279 = vcvt.s32.f32 %v215
      %v280 = vcvt.s32.f32 %v216
      %v281 = vcvt.s32.f32 %v217
      %v282 = vcvt.s32.f32 %v218
      %v283 = vcvt.s32.f32 %v219
      %v284 = vcvt.s32.f32 %v220
      %v285 = vcvt.s32.f32 %v221
      %v286 = vcvt.s32.f32 %v222
      %v287 = vcvt.s32.f32 %v223
      %v288 = vcvt.s32.f32 %v224
      %v289 = vcvt.s32.f32 %v225
      %v290 = vcvt.s32.f32 %v226
      %v291 = vcvt.s32.f32 %v227
      %v292 = vcvt.s32.f32 %v228
      %v293 = vcvt.s32.f32 %v229
      %v294 = vcvt.s32.f32 %v230
      %v295 = vcvt.s32.f32 %v231
      %v296 = vcvt.s32.f32 %v232
      %v297 = vcvt.s32.f32 %v233
      %v298 = vcvt.s32.f32 %v234
      %v299 = vcvt.s32.f32 %v235
      %v300 = vcvt.s32.f32 %v236
      %v301 = vcvt.s32.f32 %v237
      %v302 = vcvt.s32.f32 %v238
      %v303 = vcvt.s32.f32 %v239
      %v304 = vcvt.s32.f32 %v240
      %v305 = vcvt.s32.f32 %v241
      %v306 = vcvt.s32.f32 %v242
      %v307 = vcvt.s32.f32 %v243
      %v308 = vcvt.s32.f32 %v244
      %v309 = vcvt.s32.f32 %v245
      %v310 = vcvt.s32.f32 %v246
      %v311 = vcvt.s32.f32 %v247
      %v312 = vcvt.s32.f32 %v248
      %v313 = vcvt.s32.f32 %v249
      %v314 = vcvt.s32.f32 %v250
      %v315 = vcvt.s32.f32 %v251
      %v316 = vcvt.s32.f32 %v252
      %v317 = vcvt.s32.f32 %v253
      %v318 = vcvt.s32.f32 %v254
      %v319 = vcvt.s32.f32 %v255
      %v320 = vcvt.s32.f32 %v256
      %v321 = vcvt.s32.f32 %v257
      %v322 = vcvt.s32.f32 %v258
      %v323 = vcvt.s32.f32 %v259
      %v324 = vcvt.s32.f32 %v260
      %v325 = vpack.c.bf16 %v261, %v261
      %v326 = vpack.c.bf16 %v262, %v262
      %v327 = vpack.c.bf16 %v263, %v263
      %v328 = vpack.c.bf16 %v264, %v264
      %v329 = vpack.c.bf16 %v265, %v265
      %v330 = vpack.c.bf16 %v266, %v266
      %v331 = vpack.c.bf16 %v267, %v267
      %v332 = vpack.c.bf16 %v268, %v268
      %v333 = vpack.c.bf16 %v269, %v269
      %v334 = vpack.c.bf16 %v270, %v270
      %v335 = vpack.c.bf16 %v271, %v271
      %v336 = vpack.c.bf16 %v272, %v272
      %v337 = vpack.c.bf16 %v273, %v273
      %v338 = vpack.c.bf16 %v274, %v274
      %v339 = vpack.c.bf16 %v275, %v275
      %v340 = vpack.c.bf16 %v276, %v276
      %v341 = vpack.c.bf16 %v277, %v277
      %v342 = vpack.c.bf16 %v278, %v278
      %v343 = vpack.c.bf16 %v279, %v279
      %v344 = vpack.c.bf16 %v280, %v280
      %v345 = vpack.c.bf16 %v281, %v281
      %v346 = vpack.c.bf16 %v282, %v282
      %v347 = vpack.c.bf16 %v283, %v283
      %v348 = vpack.c.bf16 %v284, %v284
      %v349 = vpack.c.bf16 %v285, %v285
      %v350 = vpack.c.bf16 %v286, %v286
      %v351 = vpack.c.bf16 %v287, %v287
      %v352 = vpack.c.bf16 %v288, %v288
      %v353 = vpack.c.bf16 %v289, %v289
      %v354 = vpack.c.bf16 %v290, %v290
      %v355 = vpack.c.bf16 %v291, %v291
      %v356 = vpack.c.bf16 %v292, %v292
      %v357 = vpack.c.bf16 %v293, %v293
      %v358 = vpack.c.bf16 %v294, %v294
      %v359 = vpack.c.bf16 %v295, %v295
      %v360 = vpack.c.bf16 %v296, %v296
      %v361 = vpack.c.bf16 %v297, %v297
      %v362 = vpack.c.bf16 %v298, %v298
      %v363 = vpack.c.bf16 %v299, %v299
      %v364 = vpack.c.bf16 %v300, %v300
      %v365 = vpack.c.bf16 %v301, %v301
      %v366 = vpack.c.bf16 %v302, %v302
      %v367 = vpack.c.bf16 %v303, %v303
      %v368 = vpack.c.bf16 %v304, %v304
      %v369 = vpack.c.bf16 %v305, %v305
      %v370 = vpack.c.bf16 %v306, %v306
      %v371 = vpack.c.bf16 %v307, %v307
      %v372 = vpack.c.bf16 %v308, %v308
      %v373 = vpack.c.bf16 %v309, %v309
      %v374 = vpack.c.bf16 %v310, %v310
      %v375 = vpack.c.bf16 %v311, %v311
      %v376 = vpack.c.bf16 %v312, %v312
      %v377 = vpack.c.bf16 %v313, %v313
      %v378 = vpack.c.bf16 %v314, %v314
      %v379 = vpack.c.bf16 %v315, %v315
      %v380 = vpack.c.bf16 %v316, %v316
      %v381 = vpack.c.bf16 %v317, %v317
      %v382 = vpack.c.bf16 %v318, %v318
      %v383 = vpack.c.bf16 %v319, %v319
      %v384 = vpack.c.bf16 %v320, %v320
      %v385 = vpack.c.bf16 %v321, %v321
      %v386 = vpack.c.bf16 %v322, %v322
      %v387 = vpack.c.bf16 %v323, %v323
      %v388 = vpack.c.bf16 %v324, %v324
      %389 = vst [vmem:[#allocation2] sm:$0xf] %v325
      %390 = vst [vmem:[#allocation2 + $0x4] sm:$0xf] %v326
      %391 = vst [vmem:[#allocation2 + $0x8] sm:$0xf] %v327
      %392 = vst [vmem:[#allocation2 + $0xc] sm:$0xf] %v328
      %393 = vst [vmem:[#allocation2 + $0x10] sm:$0xf] %v329
      %394 = vst [vmem:[#allocation2 + $0x14] sm:$0xf] %v330
      %395 = vst [vmem:[#allocation2 + $0x18] sm:$0xf] %v331
      %396 = vst [vmem:[#allocation2 + $0x1c] sm:$0xf] %v332
      %397 = vst [vmem:[#allocation2 + $0x20] sm:$0xf] %v333
      %398 = vst [vmem:[#allocation2 + $0x24] sm:$0xf] %v334
      %399 = vst [vmem:[#allocation2 + $0x28] sm:$0xf] %v335
      %400 = vst [vmem:[#allocation2 + $0x2c] sm:$0xf] %v336
      %401 = vst [vmem:[#allocation2 + $0x30] sm:$0xf] %v337
      %402 = vst [vmem:[#allocation2 + $0x34] sm:$0xf] %v338
      %403 = vst [vmem:[#allocation2 + $0x38] sm:$0xf] %v339
      %404 = vst [vmem:[#allocation2 + $0x3c] sm:$0xf] %v340
      %405 = vst [vmem:[#allocation2 + $0x40] sm:$0xf] %v341
      %406 = vst [vmem:[#allocation2 + $0x44] sm:$0xf] %v342
      %407 = vst [vmem:[#allocation2 + $0x48] sm:$0xf] %v343
      %408 = vst [vmem:[#allocation2 + $0x4c] sm:$0xf] %v344
      %409 = vst [vmem:[#allocation2 + $0x50] sm:$0xf] %v345
      %410 = vst [vmem:[#allocation2 + $0x54] sm:$0xf] %v346
      %411 = vst [vmem:[#allocation2 + $0x58] sm:$0xf] %v347
      %412 = vst [vmem:[#allocation2 + $0x5c] sm:$0xf] %v348
      %413 = vst [vmem:[#allocation2 + $0x60] sm:$0xf] %v349
      %414 = vst [vmem:[#allocation2 + $0x64] sm:$0xf] %v350
      %415 = vst [vmem:[#allocation2 + $0x68] sm:$0xf] %v351
      %416 = vst [vmem:[#allocation2 + $0x6c] sm:$0xf] %v352
      %417 = vst [vmem:[#allocation2 + $0x70] sm:$0xf] %v353
      %418 = vst [vmem:[#allocation2 + $0x74] sm:$0xf] %v354
      %419 = vst [vmem:[#allocation2 + $0x78] sm:$0xf] %v355
      %420 = vst [vmem:[#allocation2 + $0x7c] sm:$0xf] %v356
      %421 = vst [vmem:[#allocation2 + $0x80] sm:$0xf] %v357
      %422 = vst [vmem:[#allocation2 + $0x84] sm:$0xf] %v358
      %423 = vst [vmem:[#allocation2 + $0x88] sm:$0xf] %v359
      %424 = vst [vmem:[#allocation2 + $0x8c] sm:$0xf] %v360
      %425 = vst [vmem:[#allocation2 + $0x90] sm:$0xf] %v361
      %426 = vst [vmem:[#allocation2 + $0x94] sm:$0xf] %v362
      %427 = vst [vmem:[#allocation2 + $0x98] sm:$0xf] %v363
      %428 = vst [vmem:[#allocation2 + $0x9c] sm:$0xf] %v364
      %429 = vst [vmem:[#allocation2 + $0xa0] sm:$0xf] %v365
      %430 = vst [vmem:[#allocation2 + $0xa4] sm:$0xf] %v366
      %431 = vst [vmem:[#allocation2 + $0xa8] sm:$0xf] %v367
      %432 = vst [vmem:[#allocation2 + $0xac] sm:$0xf] %v368
      %433 = vst [vmem:[#allocation2 + $0xb0] sm:$0xf] %v369
      %434 = vst [vmem:[#allocation2 + $0xb4] sm:$0xf] %v370
      %435 = vst [vmem:[#allocation2 + $0xb8] sm:$0xf] %v371
      %436 = vst [vmem:[#allocation2 + $0xbc] sm:$0xf] %v372
      %437 = vst [vmem:[#allocation2 + $0xc0] sm:$0xf] %v373
      %438 = vst [vmem:[#allocation2 + $0xc4] sm:$0xf] %v374
      %439 = vst [vmem:[#allocation2 + $0xc8] sm:$0xf] %v375
      %440 = vst [vmem:[#allocation2 + $0xcc] sm:$0xf] %v376
      %441 = vst [vmem:[#allocation2 + $0xd0] sm:$0xf] %v377
      %442 = vst [vmem:[#allocation2 + $0xd4] sm:$0xf] %v378
      %443 = vst [vmem:[#allocation2 + $0xd8] sm:$0xf] %v379
      %444 = vst [vmem:[#allocation2 + $0xdc] sm:$0xf] %v380
      %445 = vst [vmem:[#allocation2 + $0xe0] sm:$0xf] %v381
      %446 = vst [vmem:[#allocation2 + $0xe4] sm:$0xf] %v382
      %447 = vst [vmem:[#allocation2 + $0xe8] sm:$0xf] %v383
      %448 = vst [vmem:[#allocation2 + $0xec] sm:$0xf] %v384
      %449 = vst [vmem:[#allocation2 + $0xf0] sm:$0xf] %v385
      %450 = vst [vmem:[#allocation2 + $0xf4] sm:$0xf] %v386
      %451 = vst [vmem:[#allocation2 + $0xf8] sm:$0xf] %v387
      %452 = vst [vmem:[#allocation2 + $0xfc] sm:$0xf] %v388
      %453 = vst [vmem:[#allocation3] sm:$0x1] 0.0
      %454 = vst [vmem:[#allocation4] sm:$0x1] 0.0
    $region17: #{tpu_custom_call.1} parent=1 // pred_fallthru
      _
    %v455 = vld [vmem:[#allocation7] sm:$0xf]
    %v457 = vperm.slane %v455, 0
    %v458 = vperm.slane %v455, 1
    %v459 = vperm.slane %v455, 2
    %v460 = vperm.slane %v455, 3
    %465 = vrot.lane.b32.xlu0 %v457, 1
    %v466 = vpop.permute.xlu0 %465
    %467 = vrot.lane.b32.xlu0 %v458, 1
    %v468 = vpop.permute.xlu0 %467
    %469 = vrot.lane.b32.xlu0 %v459, 1
    %v470 = vpop.permute.xlu0 %469
    %471 = vrot.lane.b32.xlu0 %v460, 1
    %v472 = vpop.permute.xlu0 %471
    %v473 = vlaneseq
    %v474 = vand.u32 %v473, 127
    %vm475 = vcmp.lt.s32.totalorder %v474, 1
    %v476 = vsel %vm475, %v470, %v472
    %v477 = vsel %vm475, %v468, %v470
    %v478 = vsel %vm475, %v466, %v468
    %v479 = vsel %vm475, %v472, %v466
    %v484 = vrot.slane %v478, 7
    %v485 = vrot.slane %v477, 6
    %v486 = vrot.slane %v476, 5
    %vm487 = vcmask 1040384
    %v488 = vsel %vm487, %v479, %v484
    %vm489 = vcmask 1042434
    %v490 = vsel %vm489, %v485, %v486
    %vm491 = vcmask 1041408
    %v492 = vsel %vm491, %v488, %v490
    %vm494 = vcmp.gt.f32.partialorder %v455, %v492
    %495 = vrot.lane.b32.xlu0 %v457, 127
    %v496 = vpop.permute.xlu0 %495
    %497 = vrot.lane.b32.xlu0 %v458, 127
    %v498 = vpop.permute.xlu0 %497
    %499 = vrot.lane.b32.xlu0 %v459, 127
    %v500 = vpop.permute.xlu0 %499
    %501 = vrot.lane.b32.xlu0 %v460, 127
    %v502 = vpop.permute.xlu0 %501
    %vm503 = vcmp.lt.s32.totalorder %v474, 127
    %v504 = vsel %vm503, %v500, %v502
    %v505 = vsel %vm503, %v498, %v500
    %v506 = vsel %vm503, %v496, %v498
    %v507 = vsel %vm503, %v502, %v496
    %v512 = vrot.slane %v505, 7
    %v513 = vrot.slane %v504, 6
    %v514 = vrot.slane %v507, 5
    %v515 = vsel %vm487, %v506, %v512
    %v516 = vsel %vm489, %v513, %v514
    %v517 = vsel %vm491, %v515, %v516
    %vm519 = vcmp.ge.f32.partialorder %v455, %v517
    %vm520 = vmand %vm494, %vm519
    %521 = vrot.lane.b32.xlu0 %v457, 126
    %v522 = vpop.permute.xlu0 %521
    %523 = vrot.lane.b32.xlu0 %v458, 126
    %v524 = vpop.permute.xlu0 %523
    %525 = vrot.lane.b32.xlu0 %v459, 126
    %v526 = vpop.permute.xlu0 %525
    %527 = vrot.lane.b32.xlu0 %v460, 126
    %v528 = vpop.permute.xlu0 %527
    %vm529 = vcmp.lt.s32.totalorder %v474, 126
    %v530 = vsel %vm529, %v526, %v528
    %v531 = vsel %vm529, %v524, %v526
    %v532 = vsel %vm529, %v522, %v524
    %v533 = vsel %vm529, %v528, %v522
    %v538 = vrot.slane %v531, 7
    %v539 = vrot.slane %v530, 6
    %v540 = vrot.slane %v533, 5
    %v541 = vsel %vm487, %v532, %v538
    %v542 = vsel %vm489, %v539, %v540
    %v543 = vsel %vm491, %v541, %v542
    %vm545 = vcmp.ge.f32.partialorder %v455, %v543
    %vm546 = vmand %vm520, %vm545
    %v547 = vsel %vm546, 1, 0
    %v548 = vcvt.s32.f32 %v547
    %v550 = vperm.slane %v548, 0
    %v551 = vperm.slane %v548, 1
    %v552 = vperm.slane %v548, 2
    %v553 = vperm.slane %v548, 3
    %v558 = vpack.c.bf16 %v550, %v550
    %v559 = vpack.c.bf16 %v551, %v551
    %v560 = vpack.c.bf16 %v552, %v552
    %v561 = vpack.c.bf16 %v553, %v553
    %v562 = vld [vmem:[#allocation2] sm:$0xf]
    %v563 = vld [vmem:[#allocation2 + $0x4] sm:$0xf]
    %v564 = vld [vmem:[#allocation2 + $0x8] sm:$0xf]
    %v565 = vld [vmem:[#allocation2 + $0xc] sm:$0xf]
    %v566 = vld [vmem:[#allocation2 + $0x10] sm:$0xf]
    %v567 = vld [vmem:[#allocation2 + $0x14] sm:$0xf]
    %v568 = vld [vmem:[#allocation2 + $0x18] sm:$0xf]
    %v569 = vld [vmem:[#allocation2 + $0x1c] sm:$0xf]
    %v570 = vld [vmem:[#allocation2 + $0x20] sm:$0xf]
    %v571 = vld [vmem:[#allocation2 + $0x24] sm:$0xf]
    %v572 = vld [vmem:[#allocation2 + $0x28] sm:$0xf]
    %v573 = vld [vmem:[#allocation2 + $0x2c] sm:$0xf]
    %v574 = vld [vmem:[#allocation2 + $0x30] sm:$0xf]
    %v575 = vld [vmem:[#allocation2 + $0x34] sm:$0xf]
    %v576 = vld [vmem:[#allocation2 + $0x38] sm:$0xf]
    %v577 = vld [vmem:[#allocation2 + $0x3c] sm:$0xf]
    %v578 = vld [vmem:[#allocation2 + $0x40] sm:$0xf]
    %v579 = vld [vmem:[#allocation2 + $0x44] sm:$0xf]
    %v580 = vld [vmem:[#allocation2 + $0x48] sm:$0xf]
    %v581 = vld [vmem:[#allocation2 + $0x4c] sm:$0xf]
    %v582 = vld [vmem:[#allocation2 + $0x50] sm:$0xf]
    %v583 = vld [vmem:[#allocation2 + $0x54] sm:$0xf]
    %v584 = vld [vmem:[#allocation2 + $0x58] sm:$0xf]
    %v585 = vld [vmem:[#allocation2 + $0x5c] sm:$0xf]
    %v586 = vld [vmem:[#allocation2 + $0x60] sm:$0xf]
    %v587 = vld [vmem:[#allocation2 + $0x64] sm:$0xf]
    %v588 = vld [vmem:[#allocation2 + $0x68] sm:$0xf]
    %v589 = vld [vmem:[#allocation2 + $0x6c] sm:$0xf]
    %v590 = vld [vmem:[#allocation2 + $0x70] sm:$0xf]
    %v591 = vld [vmem:[#allocation2 + $0x74] sm:$0xf]
    %v592 = vld [vmem:[#allocation2 + $0x78] sm:$0xf]
    %v593 = vld [vmem:[#allocation2 + $0x7c] sm:$0xf]
    %v594 = vld [vmem:[#allocation2 + $0x80] sm:$0xf]
    %v595 = vld [vmem:[#allocation2 + $0x84] sm:$0xf]
    %v596 = vld [vmem:[#allocation2 + $0x88] sm:$0xf]
    %v597 = vld [vmem:[#allocation2 + $0x8c] sm:$0xf]
    %v598 = vld [vmem:[#allocation2 + $0x90] sm:$0xf]
    %v599 = vld [vmem:[#allocation2 + $0x94] sm:$0xf]
    %v600 = vld [vmem:[#allocation2 + $0x98] sm:$0xf]
    %v601 = vld [vmem:[#allocation2 + $0x9c] sm:$0xf]
    %v602 = vld [vmem:[#allocation2 + $0xa0] sm:$0xf]
    %v603 = vld [vmem:[#allocation2 + $0xa4] sm:$0xf]
    %v604 = vld [vmem:[#allocation2 + $0xa8] sm:$0xf]
    %v605 = vld [vmem:[#allocation2 + $0xac] sm:$0xf]
    %v606 = vld [vmem:[#allocation2 + $0xb0] sm:$0xf]
    %v607 = vld [vmem:[#allocation2 + $0xb4] sm:$0xf]
    %v608 = vld [vmem:[#allocation2 + $0xb8] sm:$0xf]
    %v609 = vld [vmem:[#allocation2 + $0xbc] sm:$0xf]
    %v610 = vld [vmem:[#allocation2 + $0xc0] sm:$0xf]
    %v611 = vld [vmem:[#allocation2 + $0xc4] sm:$0xf]
    %v612 = vld [vmem:[#allocation2 + $0xc8] sm:$0xf]
    %v613 = vld [vmem:[#allocation2 + $0xcc] sm:$0xf]
    %v614 = vld [vmem:[#allocation2 + $0xd0] sm:$0xf]
    %v615 = vld [vmem:[#allocation2 + $0xd4] sm:$0xf]
    %v616 = vld [vmem:[#allocation2 + $0xd8] sm:$0xf]
    %v617 = vld [vmem:[#allocation2 + $0xdc] sm:$0xf]
    %v618 = vld [vmem:[#allocation2 + $0xe0] sm:$0xf]
    %v619 = vld [vmem:[#allocation2 + $0xe4] sm:$0xf]
    %v620 = vld [vmem:[#allocation2 + $0xe8] sm:$0xf]
    %v621 = vld [vmem:[#allocation2 + $0xec] sm:$0xf]
    %v622 = vld [vmem:[#allocation2 + $0xf0] sm:$0xf]
    %v623 = vld [vmem:[#allocation2 + $0xf4] sm:$0xf]
    %v624 = vld [vmem:[#allocation2 + $0xf8] sm:$0xf]
    %v625 = vld [vmem:[#allocation2 + $0xfc] sm:$0xf]
    %v690 = vunpack.c.l.b16 %v562
    %v691 = vunpack.c.l.b16 %v563
    %v692 = vunpack.c.l.b16 %v564
    %v693 = vunpack.c.l.b16 %v565
    %v694 = vunpack.c.l.b16 %v566
    %v695 = vunpack.c.l.b16 %v567
    %v696 = vunpack.c.l.b16 %v568
    %v697 = vunpack.c.l.b16 %v569
    %v698 = vunpack.c.l.b16 %v570
    %v699 = vunpack.c.l.b16 %v571
    %v700 = vunpack.c.l.b16 %v572
    %v701 = vunpack.c.l.b16 %v573
    %v702 = vunpack.c.l.b16 %v574
    %v703 = vunpack.c.l.b16 %v575
    %v704 = vunpack.c.l.b16 %v576
    %v705 = vunpack.c.l.b16 %v577
    %v706 = vunpack.c.l.b16 %v578
    %v707 = vunpack.c.l.b16 %v579
    %v708 = vunpack.c.l.b16 %v580
    %v709 = vunpack.c.l.b16 %v581
    %v710 = vunpack.c.l.b16 %v582
    %v711 = vunpack.c.l.b16 %v583
    %v712 = vunpack.c.l.b16 %v584
    %v713 = vunpack.c.l.b16 %v585
    %v714 = vunpack.c.l.b16 %v586
    %v715 = vunpack.c.l.b16 %v587
    %v716 = vunpack.c.l.b16 %v588
    %v717 = vunpack.c.l.b16 %v589
    %v718 = vunpack.c.l.b16 %v590
    %v719 = vunpack.c.l.b16 %v591
    %v720 = vunpack.c.l.b16 %v592
    %v721 = vunpack.c.l.b16 %v593
    %v722 = vunpack.c.l.b16 %v594
    %v723 = vunpack.c.l.b16 %v595
    %v724 = vunpack.c.l.b16 %v596
    %v725 = vunpack.c.l.b16 %v597
    %v726 = vunpack.c.l.b16 %v598
    %v727 = vunpack.c.l.b16 %v599
    %v728 = vunpack.c.l.b16 %v600
    %v729 = vunpack.c.l.b16 %v601
    %v730 = vunpack.c.l.b16 %v602
    %v731 = vunpack.c.l.b16 %v603
    %v732 = vunpack.c.l.b16 %v604
    %v733 = vunpack.c.l.b16 %v605
    %v734 = vunpack.c.l.b16 %v606
    %v735 = vunpack.c.l.b16 %v607
    %v736 = vunpack.c.l.b16 %v608
    %v737 = vunpack.c.l.b16 %v609
    %v738 = vunpack.c.l.b16 %v610
    %v739 = vunpack.c.l.b16 %v611
    %v740 = vunpack.c.l.b16 %v612
    %v741 = vunpack.c.l.b16 %v613
    %v742 = vunpack.c.l.b16 %v614
    %v743 = vunpack.c.l.b16 %v615
    %v744 = vunpack.c.l.b16 %v616
    %v745 = vunpack.c.l.b16 %v617
    %v746 = vunpack.c.l.b16 %v618
    %v747 = vunpack.c.l.b16 %v619
    %v748 = vunpack.c.l.b16 %v620
    %v749 = vunpack.c.l.b16 %v621
    %v750 = vunpack.c.l.b16 %v622
    %v751 = vunpack.c.l.b16 %v623
    %v752 = vunpack.c.l.b16 %v624
    %v753 = vunpack.c.l.b16 %v625
    %v754 = vpack.c.b16 %v691, %v690
    %v755 = vpack.c.b16 %v693, %v692
    %v756 = vpack.c.b16 %v695, %v694
    %v757 = vpack.c.b16 %v697, %v696
    %v758 = vpack.c.b16 %v699, %v698
    %v759 = vpack.c.b16 %v701, %v700
    %v760 = vpack.c.b16 %v703, %v702
    %v761 = vpack.c.b16 %v705, %v704
    %v762 = vpack.c.b16 %v707, %v706
    %v763 = vpack.c.b16 %v709, %v708
    %v764 = vpack.c.b16 %v711, %v710
    %v765 = vpack.c.b16 %v713, %v712
    %v766 = vpack.c.b16 %v715, %v714
    %v767 = vpack.c.b16 %v717, %v716
    %v768 = vpack.c.b16 %v719, %v718
    %v769 = vpack.c.b16 %v721, %v720
    %v770 = vpack.c.b16 %v723, %v722
    %v771 = vpack.c.b16 %v725, %v724
    %v772 = vpack.c.b16 %v727, %v726
    %v773 = vpack.c.b16 %v729, %v728
    %v774 = vpack.c.b16 %v731, %v730
    %v775 = vpack.c.b16 %v733, %v732
    %v776 = vpack.c.b16 %v735, %v734
    %v777 = vpack.c.b16 %v737, %v736
    %v778 = vpack.c.b16 %v739, %v738
    %v779 = vpack.c.b16 %v741, %v740
    %v780 = vpack.c.b16 %v743, %v742
    %v781 = vpack.c.b16 %v745, %v744
    %v782 = vpack.c.b16 %v747, %v746
    %v783 = vpack.c.b16 %v749, %v748
    %v784 = vpack.c.b16 %v751, %v750
    %v785 = vpack.c.b16 %v753, %v752
    %818 = vmatpush.bf16.msra.mxu0 %v761
    %819 = vmatpush.bf16.msra.mxu0 %v760
    %820 = vmatpush.bf16.msra.mxu0 %v759
    %821 = vmatpush.bf16.msra.mxu0 %v758
    %822 = vmatpush.bf16.msra.mxu0 %v757
    %823 = vmatpush.bf16.msra.mxu0 %v756
    %824 = vmatpush.bf16.msra.mxu0 %v755
    %825 = vmatpush.bf16.msra.mxu0 %v754
    %826 = vmatmul.bf16.gmra.mxu0 %v558
    %v827 = vpop.f32.mrf.mxu0
    %v828 = vadd.f32 0.0, %v827
    %v829 = vpop.f32.mrf.mxu0
    %830 = vdwg.mxu0
    %831 = vmatpush.bf16.msra.mxu0 %v769
    %832 = vmatpush.bf16.msra.mxu0 %v768
    %833 = vmatpush.bf16.msra.mxu0 %v767
    %834 = vmatpush.bf16.msra.mxu0 %v766
    %835 = vmatpush.bf16.msra.mxu0 %v765
    %836 = vmatpush.bf16.msra.mxu0 %v764
    %837 = vmatpush.bf16.msra.mxu0 %v763
    %838 = vmatpush.bf16.msra.mxu0 %v762
    %839 = vmatmul.bf16.gmra.mxu0 %v559
    %v840 = vpop.f32.mrf.mxu0
    %v841 = vadd.f32 %v828, %v840
    %v842 = vpop.f32.mrf.mxu0
    %843 = vdwg.mxu0
    %844 = vmatpush.bf16.msra.mxu0 %v777
    %845 = vmatpush.bf16.msra.mxu0 %v776
    %846 = vmatpush.bf16.msra.mxu0 %v775
    %847 = vmatpush.bf16.msra.mxu0 %v774
    %848 = vmatpush.bf16.msra.mxu0 %v773
    %849 = vmatpush.bf16.msra.mxu0 %v772
    %850 = vmatpush.bf16.msra.mxu0 %v771
    %851 = vmatpush.bf16.msra.mxu0 %v770
    %852 = vmatmul.bf16.gmra.mxu0 %v560
    %v853 = vpop.f32.mrf.mxu0
    %v854 = vadd.f32 %v841, %v853
    %v855 = vpop.f32.mrf.mxu0
    %856 = vdwg.mxu0
    %857 = vmatpush.bf16.msra.mxu0 %v785
    %858 = vmatpush.bf16.msra.mxu0 %v784
    %859 = vmatpush.bf16.msra.mxu0 %v783
    %860 = vmatpush.bf16.msra.mxu0 %v782
    %861 = vmatpush.bf16.msra.mxu0 %v781
    %862 = vmatpush.bf16.msra.mxu0 %v780
    %863 = vmatpush.bf16.msra.mxu0 %v779
    %864 = vmatpush.bf16.msra.mxu0 %v778
    %865 = vmatmul.bf16.gmra.mxu0 %v561
    %v866 = vpop.f32.mrf.mxu0
    %v867 = vadd.f32 %v854, %v866
    %v868 = vpop.f32.mrf.mxu0
    %869 = vdwg.mxu0
    %s870 = sadd.s32 0, 0
    %v871 = vlaneseq
    %v872 = vshrl.u32 %v871, 7
    %v873 = vstv %s870
    %v874 = vadd.s32 %v873, %v872
    %v875 = vmul.u32 %v874, 128
    %v876 = vadd.s32 %v875, %v474
    %s877 = sld [smem:[#allocation6]]
    %v878 = vstv %s877
    %vm879 = vcmp.lt.s32.totalorder %v876, %v878
    %v880 = vld [vmem:[%s56] sm:$0x1]
    %v881 = vld [vmem:[#allocation3] sm:$0x1]
    %v882 = vmul.f32 %v880, %v867
    %v883 = vsel %vm879, %v882, 0.0
    %v884 = vadd.f32 %v883, 0.0
    %v885 = vadd.f32 %v881, %v884
    %886 = vst [vmem:[#allocation3] sm:$0x1] %v885
    %v887 = vld [vmem:[#allocation4] sm:$0x1]
    %v888 = vsel %vm879, %v867, 0.0
    %v889 = vadd.f32 %v888, 0.0
    %v890 = vadd.f32 %v887, %v889
    %891 = vst [vmem:[#allocation4] sm:$0x1] %v890
    // Predicated region
    $region18: #{tpu_custom_call.1} parent=1 // pred_check
      %p892 = pneg %p60
    $region19: #{tpu_custom_call.1} parent=1 // pred_check_branch
      %894 = sbr.rel (%p892) target = $region21
    $region20: #{tpu_custom_call.1} parent=1 // pred_region
      %v895 = vld [vmem:[#allocation3] sm:$0x1]
      %v896 = vsel %vm487, %v895, 0.0
      %897 = vadd.xlane.f32.xlu0 %v896
      %v898 = vpop.xlane.xlu0 %897
      %v899 = vrot.slane %v898, 4
      %v900 = vadd.f32 %v898, %v899
      %v901 = vrot.slane %v900, 2
      %v902 = vadd.f32 %v900, %v901
      %v903 = vrot.slane %v902, 1
      %v904 = vadd.f32 %v902, %v903
      %s905 = vtos %v904
      %v906 = vld [vmem:[#allocation4] sm:$0x1]
      %v907 = vsel %vm487, %v906, 0.0
      %908 = vadd.xlane.f32.xlu0 %v907
      %v909 = vpop.xlane.xlu0 %908
      %v910 = vrot.slane %v909, 4
      %v911 = vadd.f32 %v909, %v910
      %v912 = vrot.slane %v911, 2
      %v913 = vadd.f32 %v911, %v912
      %v914 = vrot.slane %v913, 1
      %v915 = vadd.f32 %v913, %v914
      %s916 = vtos %v915
      %vm917 = vcmp.eq.s32.totalorder %v872, 0
      %vm918 = vcmp.eq.s32.totalorder %v872, 1
      %v919 = vstv %s916
      %v920 = vsel %vm918, %v919, 0.0
      %v921 = vstv %s905
      %v922 = vsel %vm917, %v921, %v920
      %923 = vst [vmem:[#allocation10] sm:$0xff] %v922
    $region21: #{tpu_custom_call.1} parent=1 // pred_fallthru
      _
    // Predicated region
    $region22: #{tpu_custom_call.1} parent=1 // pred_check
      _
    $region23: #{tpu_custom_call.1} parent=1 // pred_check_branch
      %925 = sbr.rel (0) target = $region25
    $region24: #{tpu_custom_call.1} parent=1 // pred_region
      %927 = vsyncadd [#allocation9], 0
      %s929 = sshll.u32 [#allocation10], 4
      %s930 = int_to_ptr.vmem [resolvable:$true] %s929
      %s931 = sshll.u32 %s3, 4
      %s932 = int_to_ptr.hbm [resolvable:$true] %s931
      %934 = dma.vmem_to_hbm [thread:$0]  %s930, 128, %s932, [#allocation9]
    $region25: #{tpu_custom_call.1} parent=1 // pred_fallthru
      _
    // Predicated region
    $region26: #{tpu_custom_call.1} parent=1 // pred_check
      _
    $region27: #{tpu_custom_call.1} parent=1 // pred_check_branch
      %936 = sbr.rel (0) target = $region29
    $region28: #{tpu_custom_call.1} parent=1 // pred_region
      %938 = dma.done [#allocation9], 128
    $region29: #{tpu_custom_call.1} parent=1 // pred_fallthru
      _
    %939 = vsyncpa [#allocation8], 1
    %940 = vsyncpa [#allocation9], 1

</llo_original>
